<compile_context>
chip_gen: v7x
topology: tpu7x:2x2x1
jax: 0.10.0
libtpu: 0.0.40
codegen_flags: <defaults>
</compile_context>

<pallas_src>
import math
import functools

import jax
import jax.numpy as jnp
from jax.experimental import pallas as pl
from jax.experimental.pallas import tpu as pltpu


def _round_up(a: int, b: int) -> int:
    return ((a + b - 1) // b) * b


def _manifold_kernel(x_ref, rhs_ref, c2w_ref, b_ref, o_ref):
    """One (TN, D) tile of points -> (TN, O) tile of outputs.

    x_ref   : (TN, D)          bf16 input points (current grid tile)
    rhs_ref : (D, 2*D*D + O)   bf16 fused RHS = [MEi | MEj | metric@W.T]
    c2w_ref : (D*D, O)         bf16 connection.reshape(D*D, D) @ W.T
    b_ref   : (1, O)           f32 bias
    o_ref   : (TN, O)          f32 output tile
    """
    D = x_ref.shape[1]
    D2 = D * D
    x = x_ref[...]                                                    # (TN, D) bf16

    # Single MXU pass over the shared K=D LHS.  Columns:
    #   [0:D2]       -> xm_i  with xm_i[n, i*D+j] = xm[n, i]
    #   [D2:2*D2]    -> xm_j  with xm_j[n, i*D+j] = xm[n, j]
    #   [2*D2:...]   -> xm @ W.T (the linear term)
    # bf16 operands => single-pass MXU; accumulation forced to f32.
    fused = jnp.dot(x, rhs_ref[...],
                    preferred_element_type=jnp.float32,
                    precision=jax.lax.Precision.DEFAULT)              # (TN, 2*D2+O) f32
    xm_i = fused[:, :D2]            # static, 128-aligned lane slices (zero-cost views)
    xm_j = fused[:, D2:2 * D2]
    xmw = fused[:, 2 * D2:]

    # Row-wise outer product of xm, lane-dense as (TN, D*D).  Multiply in f32 on the
    # VPU (v5e has no bf16 VPU); cast to bf16 only as the MXU operand below.
    outer = (xm_i * xm_j).astype(jnp.bfloat16)

    # Quadratic "parallel transport" term: one K=D*D=256 matmul (exactly fills the
    # 256-deep MXU on v6e/v7x; two passes on v5e's 128-wide MXU).
    quad = jnp.dot(outer, c2w_ref[...],
                   preferred_element_type=jnp.float32,
                   precision=jax.lax.Precision.DEFAULT)               # (TN, O) f32

    o_ref[...] = xmw + quad + b_ref[...]
    # NOTE: O=32 (<128 lanes) -> masked partial output stores; they currently hide
    # under the MXU bottleneck, so O is deliberately NOT padded to 128.


@functools.partial(jax.jit, static_argnames=("block_n",))
def manifold_layer(x, metric_tensor, connection, proj_w, proj_b, *, block_n=2048):
    """Pallas TPU forward of ManifoldLayer. x: (N, D) f32 -> (N, O) f32."""
    N, D = x.shape
    O = proj_w.shape[0]
    f32, bf16 = jnp.float32, jnp.bfloat16
    hi = jax.lax.Precision.HIGHEST

    # ---- parameter-only algebra: done ONCE in XLA (tiny, exact f32), outside the grid ----
    metric = jnp.matmul(metric_tensor.astype(f32), metric_tensor.T.astype(f32),
                        precision=hi)                                  # (D, D)
    wt = proj_w.T.astype(f32)                                          # (D, O)
    mw = jnp.matmul(metric, wt, precision=hi)                          # (D, O)
    c2w = jnp.matmul(connection.reshape(D * D, D).astype(f32), wt,
                     precision=hi)                                     # (D*D, O)
    ones_row = jnp.ones((1, D), f32)
    mei = jnp.kron(metric, ones_row)                                   # (D, D*D)
    mej = jnp.kron(ones_row, metric)                                   # (D, D*D)

    # Streamed MXU operands in bf16 (f32 accumulation happens in-kernel).
    fused_rhs = jnp.concatenate([mei, mej, mw], axis=1).astype(bf16)   # (D, 2*D*D+O)
    c2w_b = c2w.astype(bf16)                                           # (D*D, O)
    b2 = proj_b.reshape(1, O).astype(f32)
    x_b = x.astype(bf16)

    # ---- tile over N ----
    # Small N: one tile (step overhead dominates anyway).  Large N: cap the tile at
    # block_n but guarantee >= 2 grid steps so ("parallel",) can shard across v7x's
    # two TensorCores (no-op on single-TC v5e/v6e).  Remainder handled by zero-pad.
    if N <= min(block_n, 512):
        tn, n_pad = N, N
    else:
        tn = min(block_n, _round_up(pl.cdiv(N, 2), 256))
        tn = max(8, (tn // 8) * 8)                 # sublane-aligned tile
        n_pad = _round_up(N, tn)
    x_p = x_b if n_pad == N else jnp.pad(x_b, ((0, n_pad - N), (0, 0)))
    grid = (n_pad // tn,)

    flops = n_pad * (2 * D * (2 * D * D + O) + D * D + 2 * D * D * O + 2 * O)
    bytes_accessed = (2 * n_pad * D + 4 * n_pad * O
                      + 2 * D * (2 * D * D + O) + 2 * D * D * O + 4 * O)

    out = pl.pallas_call(
        _manifold_kernel,
        out_shape=jax.ShapeDtypeStruct((n_pad, O), f32),
        grid_spec=pltpu.PrefetchScalarGridSpec(
            num_scalar_prefetch=0,
            grid=grid,
            in_specs=[
                pl.BlockSpec((tn, D), lambda i: (i, 0)),            # x tile (pipelined)
                pl.BlockSpec((D, 2 * D * D + O), lambda i: (0, 0)),  # fused RHS (resident)
                pl.BlockSpec((D * D, O), lambda i: (0, 0)),          # C2W (resident)
                pl.BlockSpec((1, O), lambda i: (0, 0)),              # bias (resident)
            ],
            out_specs=pl.BlockSpec((tn, O), lambda i: (i, 0)),
        ),
        compiler_params=pltpu.CompilerParams(
            dimension_semantics=("parallel",),
        ),
        cost_estimate=pl.CostEstimate(
            flops=flops, transcendentals=0, bytes_accessed=bytes_accessed),
    )(x_p, fused_rhs, c2w_b, b2)

    return out if n_pad == N else out[:N]


def _ref_forward(x, metric_tensor, connection, proj_w, proj_b):
    """Exact-f32 pure-JAX reference mirroring the PyTorch module."""
    hi = jax.lax.Precision.HIGHEST
    metric = jnp.matmul(metric_tensor, metric_tensor.T, precision=hi)
    xm = jnp.matmul(x, metric, precision=hi)
    # (pairwise geodesic distances are computed in torch but never used downstream)
    quad = jnp.einsum('ni,nj,ijk->nk', xm, xm, connection, precision=hi)
    return jnp.matmul(xm + quad, proj_w.T, precision=hi) + proj_b


def _ref_forward_quantized(x, metric_tensor, connection, proj_w, proj_b):
    """Plain-JAX reference that mirrors the kernel's bf16-operand / f32-accumulate
    numerics (parameters folded exactly as in the wrapper).  Used for a tight check
    of the kernel algebra/tiling, independent of bf16 quantization error."""
    f32, bf16 = jnp.float32, jnp.bfloat16
    hi = jax.lax.Precision.HIGHEST
    N, D = x.shape
    metric = jnp.matmul(metric_tensor, metric_tensor.T, precision=hi)
    wt = proj_w.T
    mw = jnp.matmul(metric, wt, precision=hi)
    c2w = jnp.matmul(connection.reshape(D * D, D), wt, precision=hi)
    xb = x.astype(bf16)
    xm = jnp.dot(xb, metric.astype(bf16), preferred_element_type=f32)
    outer = (xm[:, :, None] * xm[:, None, :]).reshape(N, D * D).astype(bf16)
    quad = jnp.dot(outer, c2w.astype(bf16), preferred_element_type=f32)
    lin = jnp.dot(xb, mw.astype(bf16), preferred_element_type=f32)
    return lin + quad + proj_b


if __name__ == "__main__":
    N, manifold_dim, output_dim = 8, 16, 32

    key = jax.random.PRNGKey(0)
    kx, km, kc, kw, kb = jax.random.split(key, 5)

    x = jax.random.normal(kx, (N, manifold_dim), dtype=jnp.float32)
    metric_tensor = jax.random.normal(km, (manifold_dim, manifold_dim),
                                      dtype=jnp.float32)
    connection = jax.random.normal(kc, (manifold_dim,) * 3, dtype=jnp.float32)
    bound = 1.0 / math.sqrt(manifold_dim)
    proj_w = jax.random.uniform(kw, (output_dim, manifold_dim),
                                minval=-bound, maxval=bound, dtype=jnp.float32)
    proj_b = jax.random.uniform(kb, (output_dim,),
                                minval=-bound, maxval=bound, dtype=jnp.float32)

    out = jax.block_until_ready(
        manifold_layer(x, metric_tensor, connection, proj_w, proj_b))
    ref_f = _ref_forward(x, metric_tensor, connection, proj_w, proj_b)
    ref_q = _ref_forward_quantized(x, metric_tensor, connection, proj_w, proj_b)
    scale = float(jnp.max(jnp.abs(ref_f)))
    assert out.shape == (N, output_dim), out.shape
    # Tight check vs. the matching bf16-operand reference (kernel algebra/tiling).
    assert float(jnp.max(jnp.abs(out - ref_q))) <= 5e-3 * scale + 1e-3, (
        float(jnp.max(jnp.abs(out - ref_q))))
    # Loose check vs. exact f32 reference: bounds the accepted bf16 quantization
    # (the review's explicit precision decision: bf16 operands, f32 accumulation).
    assert float(jnp.max(jnp.abs(out - ref_f))) <= 5e-2 * scale + 1e-3, (
        float(jnp.max(jnp.abs(out - ref_f))))

    # Also exercise the multi-tile grid + remainder-padding path (small shapes).
    N2 = 200
    x2 = jax.random.normal(kx, (N2, manifold_dim), dtype=jnp.float32)
    out2 = jax.block_until_ready(
        manifold_layer(x2, metric_tensor, connection, proj_w, proj_b, block_n=128))
    ref2_f = _ref_forward(x2, metric_tensor, connection, proj_w, proj_b)
    ref2_q = _ref_forward_quantized(x2, metric_tensor, connection, proj_w, proj_b)
    scale2 = float(jnp.max(jnp.abs(ref2_f)))
    assert out2.shape == (N2, output_dim), out2.shape
    assert float(jnp.max(jnp.abs(out2 - ref2_q))) <= 5e-3 * scale2 + 1e-3, (
        float(jnp.max(jnp.abs(out2 - ref2_q))))
    assert float(jnp.max(jnp.abs(out2 - ref2_f))) <= 5e-2 * scale2 + 1e-3, (
        float(jnp.max(jnp.abs(out2 - ref2_f))))

    print("KERNEL_OK")
</pallas_src>

<mosaic_0001>
module attributes {stable_mosaic.version = 11 : i64} {
  func.func @_manifold_kernel(%arg0: i32, %arg1: memref<8x16xbf16, #tpu.memory_space<vmem>>, %arg2: memref<16x544xbf16, #tpu.memory_space<vmem>>, %arg3: memref<256x32xbf16, #tpu.memory_space<vmem>>, %arg4: memref<1x32xf32, #tpu.memory_space<vmem>>, %arg5: memref<8x32xf32, #tpu.memory_space<vmem>>) attributes {dimension_semantics = [#tpu.dimension_semantics<parallel>], iteration_bounds = array<i64: 1>, scalar_prefetch = 0 : i64, scratch_operands = 0 : i64, tpu.core_type = #tpu.core_type<tc>, window_params = [{transform_indices = @transform_0, window_bounds = array<i64: 8, 16>}, {pipeline_mode = #tpu.pipeline_mode<synchronous>, transform_indices = @transform_1, window_bounds = array<i64: 16, 544>}, {pipeline_mode = #tpu.pipeline_mode<synchronous>, transform_indices = @transform_2, window_bounds = array<i64: 256, 32>}, {pipeline_mode = #tpu.pipeline_mode<synchronous>, transform_indices = @transform_3, window_bounds = array<i64: 1, 32>}, {transform_indices = @transform_4, window_bounds = array<i64: 8, 32>}]} {
    %c0 = arith.constant 0 : index
    %c0_0 = arith.constant 0 : index
    %0 = vector.load %arg1[%c0, %c0_0] : memref<8x16xbf16, #tpu.memory_space<vmem>>, vector<8x16xbf16>
    %c0_1 = arith.constant 0 : index
    %c0_2 = arith.constant 0 : index
    %1 = vector.load %arg2[%c0_1, %c0_2] : memref<16x544xbf16, #tpu.memory_space<vmem>>, vector<16x544xbf16>
    %cst = arith.constant dense<0.000000e+00> : vector<8x544xf32>
    %2 = tpu.matmul %0, %1, %cst {dimension_numbers = #tpu.dot_dimension_numbers<[1], [0], [0], [1], [0, 0, 1, 1], [], []>} : vector<8x16xbf16>, vector<16x544xbf16>, vector<8x544xf32> -> vector<8x544xf32>
    %3 = vector.extract_strided_slice %2 {offsets = [0, 0], sizes = [8, 256], strides = [1, 1]} : vector<8x544xf32> to vector<8x256xf32>
    %4 = vector.extract_strided_slice %2 {offsets = [0, 256], sizes = [8, 256], strides = [1, 1]} : vector<8x544xf32> to vector<8x256xf32>
    %5 = vector.extract_strided_slice %2 {offsets = [0, 512], sizes = [8, 32], strides = [1, 1]} : vector<8x544xf32> to vector<8x32xf32>
    %6 = arith.mulf %3, %4 : vector<8x256xf32>
    %7 = arith.truncf %6 : vector<8x256xf32> to vector<8x256xbf16>
    %c0_3 = arith.constant 0 : index
    %c0_4 = arith.constant 0 : index
    %8 = vector.load %arg3[%c0_3, %c0_4] : memref<256x32xbf16, #tpu.memory_space<vmem>>, vector<256x32xbf16>
    %cst_5 = arith.constant dense<0.000000e+00> : vector<8x32xf32>
    %9 = tpu.matmul %7, %8, %cst_5 {dimension_numbers = #tpu.dot_dimension_numbers<[1], [0], [0], [1], [0, 0, 1, 1], [], []>} : vector<8x256xbf16>, vector<256x32xbf16>, vector<8x32xf32> -> vector<8x32xf32>
    %10 = arith.addf %5, %9 : vector<8x32xf32>
    %c0_6 = arith.constant 0 : index
    %c0_7 = arith.constant 0 : index
    %11 = vector.load %arg4[%c0_6, %c0_7] : memref<1x32xf32, #tpu.memory_space<vmem>>, vector<1x32xf32>
    %12 = vector.broadcast %11 : vector<1x32xf32> to vector<8x32xf32>
    %13 = arith.addf %10, %12 : vector<8x32xf32>
    %c0_8 = arith.constant 0 : index
    %c0_9 = arith.constant 0 : index
    %14 = vector.load %arg5[%c0_8, %c0_9] : memref<8x32xf32, #tpu.memory_space<vmem>>, vector<8x32xf32>
    tpu.vector_store %arg5[%c0_8, %c0_9], %13 {strides = array<i32>} : memref<8x32xf32, #tpu.memory_space<vmem>>, vector<8x32xf32>,
    return
  }
  func.func @transform_0(%arg0: i32) -> (i32, i32) {
    %c0_i32 = arith.constant 0 : i32
    %c0_i32_0 = arith.constant 0 : i32
    return %arg0, %c0_i32 : i32, i32
  }
  func.func @transform_1(%arg0: i32) -> (i32, i32) {
    %c0_i32 = arith.constant 0 : i32
    %c0_i32_0 = arith.constant 0 : i32
    %c0_i32_1 = arith.constant 0 : i32
    return %c0_i32, %c0_i32_0 : i32, i32
  }
  func.func @transform_2(%arg0: i32) -> (i32, i32) {
    %c0_i32 = arith.constant 0 : i32
    %c0_i32_0 = arith.constant 0 : i32
    %c0_i32_1 = arith.constant 0 : i32
    return %c0_i32, %c0_i32_0 : i32, i32
  }
  func.func @transform_3(%arg0: i32) -> (i32, i32) {
    %c0_i32 = arith.constant 0 : i32
    %c0_i32_0 = arith.constant 0 : i32
    %c0_i32_1 = arith.constant 0 : i32
    return %c0_i32, %c0_i32_0 : i32, i32
  }
  func.func @transform_4(%arg0: i32) -> (i32, i32) {
    %c0_i32 = arith.constant 0 : i32
    %c0_i32_0 = arith.constant 0 : i32
    return %arg0, %c0_i32 : i32, i32
  }
}

</mosaic_0001>

<llo_original>
// kernel: manifold_layer.1
$region0: #{manifold_layer.1}
  #allocation0 [shape = 'u32[]', space=smem, size = 0x4, offset = 0x4, fixed_abs, tag = 'smem constant byte address 0x4 - core index']
  #allocation1 [shape = 'u32[144,128]{1,0:T(1,128)}', space=vmem, size = 0x12000, scoped, tag = 'internal scratch']
  %s0 = inlined_call_operand.vmem [shape: bf16[8,16], index: 0, kind: input, shape index: {}]
  %s1 = inlined_call_operand.vmem [shape: bf16[16,544], index: 1, kind: input, shape index: {}]
  %s2 = inlined_call_operand.vmem [shape: bf16[256,32], index: 2, kind: input, shape index: {}]
  %s3 = inlined_call_operand.vmem [shape: f32[1,32], index: 3, kind: input, shape index: {}]
  %s4 = inlined_call_operand.hbm [shape: f32[8,32], index: 4, kind: output, shape index: {}]
  %s5 = sld [smem:[#allocation0]]
  $region26: #{manifold_layer.1} parent=0
    _
  %s7 = ssub.s32 1, %s5
  %s8 = scalar_select 0, %s7, %s5
  $region1: #{manifold_layer.1} parent=0
    #allocation2 [shape = 'u8[4096]{0}', space=vmem, size = 0x1000, scoped, tag = 'output window, operand 0, single buffered']
    #allocation3 [shape = 's32[1]{0}', space=sflag, size = 0x4, scoped, tag = 'scoped memory for manifold_layer.1']
    %9 = vsyncpa [#allocation3], 0
    // Predicated region
    $region2: #{manifold_layer.1} parent=1 // pred_check
      _
    $region3: #{manifold_layer.1} parent=1 // pred_check_branch
      %11 = sbr.rel (0) target = $region5
    $region4: #{manifold_layer.1} parent=1 // pred_region
      _
    $region5: #{manifold_layer.1} parent=1 // pred_fallthru
      _
    // Predicated region
    $region6: #{manifold_layer.1} parent=1 // pred_check
      _
    $region7: #{manifold_layer.1} parent=1 // pred_check_branch
      %13 = sbr.rel (0) target = $region9
    $region8: #{manifold_layer.1} parent=1 // pred_region
      _
    $region9: #{manifold_layer.1} parent=1 // pred_fallthru
      _
    // Predicated region
    $region10: #{manifold_layer.1} parent=1 // pred_check
      _
    $region11: #{manifold_layer.1} parent=1 // pred_check_branch
      %15 = sbr.rel (0) target = $region13
    $region12: #{manifold_layer.1} parent=1 // pred_region
      _
    $region13: #{manifold_layer.1} parent=1 // pred_fallthru
      _
    // Predicated region
    $region14: #{manifold_layer.1} parent=1 // pred_check
      _
    $region15: #{manifold_layer.1} parent=1 // pred_check_branch
      %17 = sbr.rel (0) target = $region17
    $region16: #{manifold_layer.1} parent=1 // pred_region
      _
    $region17: #{manifold_layer.1} parent=1 // pred_fallthru
      _
    %v19 = vld [vmem:[%s0] sm:$0xf]
    %v20 = vld [vmem:[%s1] sm:$0xff]
    %v21 = vld [vmem:[%s1 + $0x8] sm:$0xff]
    %v22 = vld [vmem:[%s1 + $0x10] sm:$0xf]
    %v23 = vld [vmem:[%s1 + $0x14] sm:$0xff]
    %v24 = vld [vmem:[%s1 + $0x1c] sm:$0xff]
    %v25 = vld [vmem:[%s1 + $0x24] sm:$0xf]
    %v32 = vunpack.c.l.b16 %v20
    %v33 = vunpack.c.h.b16 %v20
    %v34 = vunpack.c.l.b16 %v21
    %v35 = vunpack.c.h.b16 %v21
    %v36 = vunpack.c.l.b16 %v22
    %v37 = vunpack.c.l.b16 %v23
    %v38 = vunpack.c.h.b16 %v23
    %v39 = vunpack.c.l.b16 %v24
    %v40 = vunpack.c.h.b16 %v24
    %v41 = vunpack.c.l.b16 %v25
    %v42 = vpack.c.b16 %v37, %v32
    %v43 = vpack.c.b16 %v38, %v33
    %v44 = vpack.c.b16 %v39, %v34
    %v45 = vpack.c.b16 %v40, %v35
    %v46 = vpack.c.b16 %v41, %v36
    %vm52 = vcmask 130048
    %v54 = vsel %vm52, %v19, 0
    %56 = vmatprep.subr.bf16.mxu0 %v43
    %57 = vmatpush1.bf16.msra.mxu0 %v42
    %58 = vmatprep.subr.bf16.mxu0 0
    %59 = vmatpush1.bf16.msra.mxu0 0
    %60 = vmatprep.subr.bf16.mxu0 0
    %61 = vmatpush1.bf16.msra.mxu0 0
    %62 = vmatprep.subr.bf16.mxu0 0
    %63 = vmatpush1.bf16.msra.mxu0 0
    %64 = vmatprep.subr.bf16.mxu0 0
    %65 = vmatpush1.bf16.msra.mxu0 0
    %66 = vmatprep.subr.bf16.mxu0 0
    %67 = vmatpush1.bf16.msra.mxu0 0
    %68 = vmatprep.subr.bf16.mxu0 0
    %69 = vmatpush1.bf16.msra.mxu0 0
    %70 = vmatprep.subr.bf16.mxu0 0
    %71 = vmatpush1.bf16.msra.mxu0 0
    %72 = vmatprep.subr.bf16.mxu0 0
    %73 = vmatpush1.bf16.msra.mxu0 0
    %74 = vmatprep.subr.bf16.mxu0 0
    %75 = vmatpush1.bf16.msra.mxu0 0
    %76 = vmatprep.subr.bf16.mxu0 0
    %77 = vmatpush1.bf16.msra.mxu0 0
    %78 = vmatprep.subr.bf16.mxu0 0
    %79 = vmatpush1.bf16.msra.mxu0 0
    %80 = vmatprep.subr.bf16.mxu0 0
    %81 = vmatpush1.bf16.msra.mxu0 0
    %82 = vmatprep.subr.bf16.mxu0 0
    %83 = vmatpush1.bf16.msra.mxu0 0
    %84 = vmatprep.subr.bf16.mxu0 0
    %85 = vmatpush1.bf16.msra.mxu0 0
    %86 = vmatprep.subr.bf16.mxu0 0
    %87 = vmatpush1.bf16.msra.mxu0 0
    %88 = vmatprep.mubr.bf16.mxu0 0
    %89 = vmatmul.mubr.bf16.gmra.mrb[0].mxu0 %v54
    %v90 = vpop.f32.mrb[0].mxu0
    %v91 = vadd.f32 0.0, %v90
    %v92 = vpop.f32.mrb[0].mxu0
    %v93 = vadd.f32 0.0, %v92
    %v94 = vpop.f32.mrb[0].mxu0
    %v95 = vpop.f32.mrb[0].mxu0
    %96 = vdwg.mxu0
    %97 = vmatprep.subr.bf16.mxu0 %v45
    %98 = vmatpush1.bf16.msra.mxu0 %v44
    %99 = vmatprep.subr.bf16.mxu0 0
    %100 = vmatpush1.bf16.msra.mxu0 0
    %101 = vmatprep.subr.bf16.mxu0 0
    %102 = vmatpush1.bf16.msra.mxu0 0
    %103 = vmatprep.subr.bf16.mxu0 0
    %104 = vmatpush1.bf16.msra.mxu0 0
    %105 = vmatprep.subr.bf16.mxu0 0
    %106 = vmatpush1.bf16.msra.mxu0 0
    %107 = vmatprep.subr.bf16.mxu0 0
    %108 = vmatpush1.bf16.msra.mxu0 0
    %109 = vmatprep.subr.bf16.mxu0 0
    %110 = vmatpush1.bf16.msra.mxu0 0
    %111 = vmatprep.subr.bf16.mxu0 0
    %112 = vmatpush1.bf16.msra.mxu0 0
    %113 = vmatprep.subr.bf16.mxu0 0
    %114 = vmatpush1.bf16.msra.mxu0 0
    %115 = vmatprep.subr.bf16.mxu0 0
    %116 = vmatpush1.bf16.msra.mxu0 0
    %117 = vmatprep.subr.bf16.mxu0 0
    %118 = vmatpush1.bf16.msra.mxu0 0
    %119 = vmatprep.subr.bf16.mxu0 0
    %120 = vmatpush1.bf16.msra.mxu0 0
    %121 = vmatprep.subr.bf16.mxu0 0
    %122 = vmatpush1.bf16.msra.mxu0 0
    %123 = vmatprep.subr.bf16.mxu0 0
    %124 = vmatpush1.bf16.msra.mxu0 0
    %125 = vmatprep.subr.bf16.mxu0 0
    %126 = vmatpush1.bf16.msra.mxu0 0
    %127 = vmatprep.subr.bf16.mxu0 0
    %128 = vmatpush1.bf16.msra.mxu0 0
    %129 = vmatprep.mubr.bf16.mxu0 0
    %130 = vmatmul.mubr.bf16.gmra.mrb[0].mxu0 %v54
    %v131 = vpop.f32.mrb[0].mxu0
    %v132 = vadd.f32 0.0, %v131
    %v133 = vpop.f32.mrb[0].mxu0
    %v134 = vadd.f32 0.0, %v133
    %v135 = vpop.f32.mrb[0].mxu0
    %v136 = vpop.f32.mrb[0].mxu0
    %137 = vdwg.mxu0
    %138 = vmatprep.subr.bf16.mxu0 0
    %139 = vmatpush1.bf16.msra.mxu0 %v46
    %140 = vmatprep.subr.bf16.mxu0 0
    %141 = vmatpush1.bf16.msra.mxu0 0
    %142 = vmatprep.subr.bf16.mxu0 0
    %143 = vmatpush1.bf16.msra.mxu0 0
    %144 = vmatprep.subr.bf16.mxu0 0
    %145 = vmatpush1.bf16.msra.mxu0 0
    %146 = vmatprep.subr.bf16.mxu0 0
    %147 = vmatpush1.bf16.msra.mxu0 0
    %148 = vmatprep.subr.bf16.mxu0 0
    %149 = vmatpush1.bf16.msra.mxu0 0
    %150 = vmatprep.subr.bf16.mxu0 0
    %151 = vmatpush1.bf16.msra.mxu0 0
    %152 = vmatprep.subr.bf16.mxu0 0
    %153 = vmatpush1.bf16.msra.mxu0 0
    %154 = vmatprep.subr.bf16.mxu0 0
    %155 = vmatpush1.bf16.msra.mxu0 0
    %156 = vmatprep.subr.bf16.mxu0 0
    %157 = vmatpush1.bf16.msra.mxu0 0
    %158 = vmatprep.subr.bf16.mxu0 0
    %159 = vmatpush1.bf16.msra.mxu0 0
    %160 = vmatprep.subr.bf16.mxu0 0
    %161 = vmatpush1.bf16.msra.mxu0 0
    %162 = vmatprep.subr.bf16.mxu0 0
    %163 = vmatpush1.bf16.msra.mxu0 0
    %164 = vmatprep.subr.bf16.mxu0 0
    %165 = vmatpush1.bf16.msra.mxu0 0
    %166 = vmatprep.subr.bf16.mxu0 0
    %167 = vmatpush1.bf16.msra.mxu0 0
    %168 = vmatprep.subr.bf16.mxu0 0
    %169 = vmatpush1.bf16.msra.mxu0 0
    %170 = vmatprep.mubr.bf16.mxu0 0
    %171 = vmatmul.mubr.bf16.gmra.mrb[0].mxu0 %v54
    %v172 = vpop.f32.mrb[0].mxu0
    %v173 = vadd.f32 0.0, %v172
    %v174 = vpop.f32.mrb[0].mxu0
    %v175 = vpop.f32.mrb[0].mxu0
    %v176 = vpop.f32.mrb[0].mxu0
    %177 = vdwg.mxu0
    %v178 = vmul.f32 %v91, %v132
    %v179 = vmul.f32 %v93, %v134
    %v180 = vpack.c.bf16 %v178, %v178
    %v181 = vpack.c.bf16 %v179, %v179
    %v182 = vld [vmem:[%s2] sm:$0xf]
    %v183 = vld [vmem:[%s2 + $0x4] sm:$0xf]
    %v184 = vld [vmem:[%s2 + $0x8] sm:$0xf]
    %v185 = vld [vmem:[%s2 + $0xc] sm:$0xf]
    %v186 = vld [vmem:[%s2 + $0x10] sm:$0xf]
    %v187 = vld [vmem:[%s2 + $0x14] sm:$0xf]
    %v188 = vld [vmem:[%s2 + $0x18] sm:$0xf]
    %v189 = vld [vmem:[%s2 + $0x1c] sm:$0xf]
    %v190 = vld [vmem:[%s2 + $0x20] sm:$0xf]
    %v191 = vld [vmem:[%s2 + $0x24] sm:$0xf]
    %v192 = vld [vmem:[%s2 + $0x28] sm:$0xf]
    %v193 = vld [vmem:[%s2 + $0x2c] sm:$0xf]
    %v194 = vld [vmem:[%s2 + $0x30] sm:$0xf]
    %v195 = vld [vmem:[%s2 + $0x34] sm:$0xf]
    %v196 = vld [vmem:[%s2 + $0x38] sm:$0xf]
    %v197 = vld [vmem:[%s2 + $0x3c] sm:$0xf]
    %v198 = vld [vmem:[%s2 + $0x40] sm:$0xf]
    %v199 = vld [vmem:[%s2 + $0x44] sm:$0xf]
    %v200 = vld [vmem:[%s2 + $0x48] sm:$0xf]
    %v201 = vld [vmem:[%s2 + $0x4c] sm:$0xf]
    %v202 = vld [vmem:[%s2 + $0x50] sm:$0xf]
    %v203 = vld [vmem:[%s2 + $0x54] sm:$0xf]
    %v204 = vld [vmem:[%s2 + $0x58] sm:$0xf]
    %v205 = vld [vmem:[%s2 + $0x5c] sm:$0xf]
    %v206 = vld [vmem:[%s2 + $0x60] sm:$0xf]
    %v207 = vld [vmem:[%s2 + $0x64] sm:$0xf]
    %v208 = vld [vmem:[%s2 + $0x68] sm:$0xf]
    %v209 = vld [vmem:[%s2 + $0x6c] sm:$0xf]
    %v210 = vld [vmem:[%s2 + $0x70] sm:$0xf]
    %v211 = vld [vmem:[%s2 + $0x74] sm:$0xf]
    %v212 = vld [vmem:[%s2 + $0x78] sm:$0xf]
    %v213 = vld [vmem:[%s2 + $0x7c] sm:$0xf]
    %v246 = vunpack.c.l.b16 %v182
    %v247 = vunpack.c.l.b16 %v183
    %v248 = vunpack.c.l.b16 %v184
    %v249 = vunpack.c.l.b16 %v185
    %v250 = vunpack.c.l.b16 %v186
    %v251 = vunpack.c.l.b16 %v187
    %v252 = vunpack.c.l.b16 %v188
    %v253 = vunpack.c.l.b16 %v189
    %v254 = vunpack.c.l.b16 %v190
    %v255 = vunpack.c.l.b16 %v191
    %v256 = vunpack.c.l.b16 %v192
    %v257 = vunpack.c.l.b16 %v193
    %v258 = vunpack.c.l.b16 %v194
    %v259 = vunpack.c.l.b16 %v195
    %v260 = vunpack.c.l.b16 %v196
    %v261 = vunpack.c.l.b16 %v197
    %v262 = vunpack.c.l.b16 %v198
    %v263 = vunpack.c.l.b16 %v199
    %v264 = vunpack.c.l.b16 %v200
    %v265 = vunpack.c.l.b16 %v201
    %v266 = vunpack.c.l.b16 %v202
    %v267 = vunpack.c.l.b16 %v203
    %v268 = vunpack.c.l.b16 %v204
    %v269 = vunpack.c.l.b16 %v205
    %v270 = vunpack.c.l.b16 %v206
    %v271 = vunpack.c.l.b16 %v207
    %v272 = vunpack.c.l.b16 %v208
    %v273 = vunpack.c.l.b16 %v209
    %v274 = vunpack.c.l.b16 %v210
    %v275 = vunpack.c.l.b16 %v211
    %v276 = vunpack.c.l.b16 %v212
    %v277 = vunpack.c.l.b16 %v213
    %v278 = vpack.c.b16 %v247, %v246
    %v279 = vpack.c.b16 %v249, %v248
    %v280 = vpack.c.b16 %v251, %v250
    %v281 = vpack.c.b16 %v253, %v252
    %v282 = vpack.c.b16 %v255, %v254
    %v283 = vpack.c.b16 %v257, %v256
    %v284 = vpack.c.b16 %v259, %v258
    %v285 = vpack.c.b16 %v261, %v260
    %v286 = vpack.c.b16 %v263, %v262
    %v287 = vpack.c.b16 %v265, %v264
    %v288 = vpack.c.b16 %v267, %v266
    %v289 = vpack.c.b16 %v269, %v268
    %v290 = vpack.c.b16 %v271, %v270
    %v291 = vpack.c.b16 %v273, %v272
    %v292 = vpack.c.b16 %v275, %v274
    %v293 = vpack.c.b16 %v277, %v276
    %310 = vmatprep.subr.bf16.mxu0 0
    %311 = vmatpush1.bf16.msra.mxu0 %v278
    %312 = vmatprep.subr.bf16.mxu0 0
    %313 = vmatpush1.bf16.msra.mxu0 %v279
    %314 = vmatprep.subr.bf16.mxu0 0
    %315 = vmatpush1.bf16.msra.mxu0 %v280
    %316 = vmatprep.subr.bf16.mxu0 0
    %317 = vmatpush1.bf16.msra.mxu0 %v281
    %318 = vmatprep.subr.bf16.mxu0 0
    %319 = vmatpush1.bf16.msra.mxu0 %v282
    %320 = vmatprep.subr.bf16.mxu0 0
    %321 = vmatpush1.bf16.msra.mxu0 %v283
    %322 = vmatprep.subr.bf16.mxu0 0
    %323 = vmatpush1.bf16.msra.mxu0 %v284
    %324 = vmatprep.subr.bf16.mxu0 0
    %325 = vmatpush1.bf16.msra.mxu0 %v285
    %326 = vmatprep.subr.bf16.mxu0 0
    %327 = vmatpush1.bf16.msra.mxu0 %v286
    %328 = vmatprep.subr.bf16.mxu0 0
    %329 = vmatpush1.bf16.msra.mxu0 %v287
    %330 = vmatprep.subr.bf16.mxu0 0
    %331 = vmatpush1.bf16.msra.mxu0 %v288
    %332 = vmatprep.subr.bf16.mxu0 0
    %333 = vmatpush1.bf16.msra.mxu0 %v289
    %334 = vmatprep.subr.bf16.mxu0 0
    %335 = vmatpush1.bf16.msra.mxu0 %v290
    %336 = vmatprep.subr.bf16.mxu0 0
    %337 = vmatpush1.bf16.msra.mxu0 %v291
    %338 = vmatprep.subr.bf16.mxu0 0
    %339 = vmatpush1.bf16.msra.mxu0 %v292
    %340 = vmatprep.subr.bf16.mxu0 0
    %341 = vmatpush1.bf16.msra.mxu0 %v293
    %342 = vmatprep.mubr.bf16.mxu0 %v181
    %343 = vmatmul.mubr.bf16.gmra.mrb[0].mxu0 %v180
    %v344 = vpop.f32.mrb[0].mxu0
    %v345 = vadd.f32 0.0, %v344
    %v346 = vpop.f32.mrb[0].mxu0
    %v347 = vpop.f32.mrb[0].mxu0
    %v348 = vpop.f32.mrb[0].mxu0
    %349 = vdwg.mxu0
    %v350 = vadd.f32 %v173, %v345
    %v351 = vld [vmem:[%s3] sm:$0x1]
    %v353 = vlaneseq
    %v354 = vshrl.u32 %v353, 7
    %v355 = vsub.s32 0, %v354
    %v356 = vrot.slane %v351, %v355
    %v358 = vadd.f32 %v350, %v356
    %vm359 = vcmask 261120
    %360 = vst.msk [vmem:[#allocation2] sm:$0xff] %vm359, %v358
    // Predicated region
    $region18: #{manifold_layer.1} parent=1 // pred_check
      _
    $region19: #{manifold_layer.1} parent=1 // pred_check_branch
      %362 = sbr.rel (0) target = $region21
    $region20: #{manifold_layer.1} parent=1 // pred_region
      %s364 = ssub.s32 128, 128
      %365 = vsyncadd [#allocation3], %s364
      %s367 = sshll.u32 [#allocation2], 4
      %s368 = int_to_ptr.vmem [resolvable:$true] %s367
      %370 = dma.vmem_to_hbm [thread:$0]  %s368, 128, %s4, [#allocation3]
    $region21: #{manifold_layer.1} parent=1 // pred_fallthru
      _
    // Predicated region
    $region22: #{manifold_layer.1} parent=1 // pred_check
      _
    $region23: #{manifold_layer.1} parent=1 // pred_check_branch
      %372 = sbr.rel (0) target = $region25
    $region24: #{manifold_layer.1} parent=1 // pred_region
      %373 = dma.done [#allocation3], 128
    $region25: #{manifold_layer.1} parent=1 // pred_fallthru
      _
    %374 = vsyncpa [#allocation3], 1

</llo_original>
